<compile_context>
chip_gen: v7x
topology: tpu7x:2x2x1
jax: 0.10.0
libtpu: 0.0.40
codegen_flags: <defaults>
</compile_context>

<pallas_src>
import functools

import jax
import jax.numpy as jnp
from jax.experimental import pallas as pl
from jax.experimental.pallas import tpu as pltpu

TAU = 0.25      # entailment temperature
_LANE = 128     # object lane-chunk width
_C_SLAB = 64    # max concept sublanes per inner slab (-> 8 f32 acc vregs)


def _round_up(x, m):
    return ((x + m - 1) // m) * m


# ----------------------------------------------------------------------------
# Kernel
# ----------------------------------------------------------------------------
def _executor_body(featT_ref, ctr_ref, off_ref, end_ref, prob_ref, end_out_ref):
    """Score one object tile against all (padded) concepts.

    featT_ref   : (D, TN)          features, objects on the 128-lane axis
    ctr_ref     : (D, C_pad, 128)  box centers, pre-replicated across lanes
    off_ref     : (C_pad, 128)     per-concept sum_d offsets, lane-replicated
    end_ref     : (1, TN) | None   running `end` attention row
    prob_ref    : (C_pad, TN) out  sigmoid entailment probabilities (optional)
    end_out_ref : (C_pad, TN) out  end * prob, filter() semantics (optional)
    """
    d_dim, tn = featT_ref.shape
    c_pad = ctr_ref.shape[1]
    inv_tau = 1.0 / TAU

    # 128-lane object chunks; each chunk finishes its D reduction, sigmoid and
    # store before the next chunk, bounding the live accumulator set.
    for j in range(tn // _LANE):
        l0 = j * _LANE
        for cs in range(0, c_pad, _C_SLAB):
            c_sz = min(_C_SLAB, c_pad - cs)
            acc = jnp.zeros((c_sz, _LANE), jnp.float32)
            for d in range(d_dim):
                # (1,128) feature row -> cheap sublane broadcast; the lane
                # replication lives in the pre-broadcast centers slab.
                f_row = featT_ref[d:d + 1, l0:l0 + _LANE].astype(jnp.float32)
                c_d = ctr_ref[d, cs:cs + c_sz, :].astype(jnp.float32)
                acc = acc + jnp.abs(c_d - f_row)
            logits = (off_ref[cs:cs + c_sz, :].astype(jnp.float32) - acc) * inv_tau
            probs = jax.nn.sigmoid(logits)          # EUP, effectively free
            if prob_ref is not None:
                prob_ref[cs:cs + c_sz, l0:l0 + _LANE] = probs.astype(prob_ref.dtype)
            if end_out_ref is not None:
                e = end_ref[0:1, l0:l0 + _LANE].astype(jnp.float32)
                end_out_ref[cs:cs + c_sz, l0:l0 + _LANE] = (e * probs).astype(
                    end_out_ref.dtype)


def _kernel_both(featT_ref, ctr_ref, off_ref, end_ref, prob_ref, end_out_ref):
    _executor_body(featT_ref, ctr_ref, off_ref, end_ref, prob_ref, end_out_ref)


def _kernel_probs(featT_ref, ctr_ref, off_ref, prob_ref):
    _executor_body(featT_ref, ctr_ref, off_ref, None, prob_ref, None)


def _kernel_end(featT_ref, ctr_ref, off_ref, end_ref, end_out_ref):
    _executor_body(featT_ref, ctr_ref, off_ref, end_ref, None, end_out_ref)


# ----------------------------------------------------------------------------
# Registry preparation (hoisted out of the per-call path)
# ----------------------------------------------------------------------------
def _prep_registry(centers, offsets):
    """Pad + pre-replicate the box registry into the kernel-ready layout.

    centers (C, D), offsets (C, D)  ->  ctr_slab (D, C_pad, 128), off_slab (C_pad, 128)
    """
    C, D = centers.shape
    c_pad = _round_up(max(C, 1), 8)
    ctr = centers.astype(jnp.float32)
    off_sum = jnp.sum(offsets.astype(jnp.float32), axis=-1)   # hoisted reduction
    if c_pad != C:
        ctr = jnp.pad(ctr, ((0, c_pad - C), (0, 0)))
        off_sum = jnp.pad(off_sum, (0, c_pad - C))
    ctr_slab = jnp.broadcast_to(ctr.T[:, :, None], (D, c_pad, _LANE))
    off_slab = jnp.broadcast_to(off_sum[:, None], (c_pad, _LANE))
    return ctr_slab, off_slab


# ----------------------------------------------------------------------------
# Core execution
# ----------------------------------------------------------------------------
@functools.partial(jax.jit,
                   static_argnames=("num_concepts", "tile_n", "want_probs",
                                    "want_end", "out_dtype"))
def _execute(features, ctr_slab, off_slab, end=None, *, num_concepts,
             tile_n=1024, want_probs=True, want_end=True,
             out_dtype=jnp.float32):
    """Score all (concept, object) pairs.

    Returns concept-major arrays: probs[c, n] / end_out[c, n] (lane-dense on
    the object axis).  Returns (probs, end_out) if both requested, else one.
    """
    assert want_probs or want_end
    N, D = features.shape
    c_pad = ctr_slab.shape[1]
    C = num_concepts

    # ---- object tiling: objects on the 128-lane axis ----
    n128 = _round_up(max(N, 1), _LANE)
    tn = min(_round_up(tile_n, _LANE), n128)
    if n128 // tn < 2 and n128 >= 2 * _LANE:
        # keep >=2 grid steps so "parallel" can shard across v7x's two TCs
        tn = _round_up(n128 // 2, _LANE)
    n_pad = _round_up(max(N, 1), tn)
    grid = (n_pad // tn,)

    featT = features.T                                   # (D, N) layout plumbing
    if n_pad != N:
        featT = jnp.pad(featT, ((0, 0), (0, n_pad - N)))

    in_arrays = [featT, ctr_slab, off_slab]
    in_specs = [
        pl.BlockSpec((D, tn), lambda i: (0, i)),              # feature tile
        pl.BlockSpec((D, c_pad, _LANE), lambda i: (0, 0, 0)), # resident centers slab
        pl.BlockSpec((c_pad, _LANE), lambda i: (0, 0)),       # resident offset sums
    ]
    if want_end:
        if end is None:
            end_row = jnp.ones((1, n_pad), jnp.float32)
        else:
            end_row = jnp.reshape(end.astype(jnp.float32), (1, N))
            if n_pad != N:
                end_row = jnp.pad(end_row, ((0, 0), (0, n_pad - N)))
        in_arrays.append(end_row)
        in_specs.append(pl.BlockSpec((1, tn), lambda i: (0, i)))

    out_shape, out_specs = [], []
    if want_probs:
        out_shape.append(jax.ShapeDtypeStruct((c_pad, n_pad), out_dtype))
        out_specs.append(pl.BlockSpec((c_pad, tn), lambda i: (0, i)))
    if want_end:
        out_shape.append(jax.ShapeDtypeStruct((c_pad, n_pad), out_dtype))
        out_specs.append(pl.BlockSpec((c_pad, tn), lambda i: (0, i)))

    if want_probs and want_end:
        kernel = _kernel_both
    elif want_probs:
        kernel = _kernel_probs
    else:
        kernel = _kernel_end

    out_itemsize = jnp.dtype(out_dtype).itemsize
    bytes_accessed = int(
        featT.size * featT.dtype.itemsize
        + ctr_slab.size * ctr_slab.dtype.itemsize
        + off_slab.size * off_slab.dtype.itemsize
        + len(out_shape) * c_pad * n_pad * out_itemsize)

    outs = pl.pallas_call(
        kernel,
        out_shape=tuple(out_shape),
        grid_spec=pltpu.PrefetchScalarGridSpec(
            num_scalar_prefetch=0,
            grid=grid,
            in_specs=in_specs,
            out_specs=tuple(out_specs),
        ),
        compiler_params=pltpu.CompilerParams(
            dimension_semantics=("parallel",)),
        cost_estimate=pl.CostEstimate(
            flops=int(3 * n_pad * c_pad * D + 4 * n_pad * c_pad),
            transcendentals=int(n_pad * c_pad),
            bytes_accessed=bytes_accessed),
    )(*in_arrays)

    if not isinstance(outs, (tuple, list)):
        outs = (outs,)
    trimmed = []
    for o in outs:
        if c_pad != C:
            o = o[:C]
        if n_pad != N:
            o = o[:, :N]
        trimmed.append(o)
    if want_probs and want_end:
        return trimmed[0], trimmed[1]
    return trimmed[0]


def scene_program_execute(features, centers, offsets, end=None, *,
                          tile_n=1024, want_probs=True, want_end=True,
                          out_dtype=jnp.float32):
    """Convenience wrapper over _execute that takes the raw (C, D) registry.

    Outputs are concept-major: probs[c, n] / end_out[c, n].  `end` may be None
    (defaults to ones).  Set out_dtype=jnp.bfloat16 to halve HBM writeback on
    bandwidth-poor chips (v5e).
    """
    ctr_slab, off_slab = _prep_registry(centers, offsets)
    return _execute(features, ctr_slab, off_slab, end,
                    num_concepts=centers.shape[0], tile_n=tile_n,
                    want_probs=want_probs, want_end=want_end,
                    out_dtype=out_dtype)


# ----------------------------------------------------------------------------
# Module-level analogue of SceneProgramExecutor
# ----------------------------------------------------------------------------
class SceneProgramExecutorJAX:
    """Thin JAX-side analogue of SceneProgramExecutor (tensor path only).

    # TODO(synk): program parsing (`parse`, `chain`), the concept-vocab file
    # load, and the external build_entailment/build_box_registry factories are
    # Python control flow with no Pallas equivalent; concept boxes are
    # synthesized in-script and the registry is cached in kernel-ready layout.
    """

    def __init__(self, num_concepts, feat_dim, key):
        k_ctr, k_off = jax.random.split(key)
        self.concept_vocab = [f"concept_{i}" for i in range(num_concepts)]
        self.num_concepts = num_concepts
        self.centers = jax.random.normal(k_ctr, (num_concepts, feat_dim),
                                         jnp.float32)
        self.offsets = jax.nn.softplus(
            jax.random.normal(k_off, (num_concepts, feat_dim), jnp.float32))
        # Registry is static -> prep (pad/transpose/reduce/replicate) once.
        self.ctr_slab, self.off_slab = _prep_registry(self.centers, self.offsets)

    def spectrum(self, node_features, concepts=None):
        """Entailment masks; row i of the returned (C, N) array is the mask
        for concepts[i] (analogue of the original list of per-concept masks)."""
        if concepts is None:
            return _execute(node_features, self.ctr_slab, self.off_slab,
                            num_concepts=self.num_concepts,
                            want_probs=True, want_end=False)
        idxs = jnp.array([self.concept_vocab.index(c) for c in concepts])
        ctr_slab, off_slab = _prep_registry(self.centers[idxs], self.offsets[idxs])
        return _execute(node_features, ctr_slab, off_slab,
                        num_concepts=len(concepts),
                        want_probs=True, want_end=False)

    def entail_prob(self, features, concept):
        """filter(scene(), concept) with end initialized to ones.  Returns (N,)."""
        idx = self.concept_vocab.index(concept)
        c_pad = self.ctr_slab.shape[1]
        base = min(idx, c_pad - 8)           # 8-sublane window containing `idx`
        ctr_slab = self.ctr_slab[:, base:base + 8, :]
        off_slab = self.off_slab[base:base + 8, :]
        end_out = _execute(features, ctr_slab, off_slab,
                           num_concepts=8, want_probs=False, want_end=True)
        return end_out[idx - base]


# ----------------------------------------------------------------------------
# Reference + self-test
# ----------------------------------------------------------------------------
def _reference(features, centers, offsets, end_col):
    diff = jnp.abs(features[:, None, :] - centers[None, :, :])
    logits = jnp.sum(offsets[None, :, :] - diff, axis=-1) / TAU
    probs = jax.nn.sigmoid(logits)
    return probs, end_col * probs            # (N, C), (N, C)


if __name__ == "__main__":
    key = jax.random.PRNGKey(0)
    k_exec, k_feat, k_f2, k_c2, k_o2 = jax.random.split(key, 5)

    # --- small canonical shape: 16 objects, 32-d features, 16 concepts ---
    N, D, C = 16, 32, 16
    executor = SceneProgramExecutorJAX(num_concepts=C, feat_dim=D, key=k_exec)
    node_features = jax.random.normal(k_feat, (N, D), jnp.float32)
    end = jnp.ones((N,), jnp.float32)

    probs_cn, end_cn = scene_program_execute(node_features, executor.centers,
                                             executor.offsets, end)
    jax.block_until_ready((probs_cn, end_cn))

    ref_probs, ref_end = _reference(node_features, executor.centers,
                                    executor.offsets, end[:, None])
    assert probs_cn.shape == (C, N) and end_cn.shape == (C, N)
    assert jnp.allclose(probs_cn, ref_probs.T, atol=2e-5, rtol=1e-5)
    assert jnp.allclose(end_cn, ref_end.T, atol=2e-5, rtol=1e-5)

    # --- module-level API (probs-only and single-concept end paths) ---
    masks = executor.spectrum(node_features)                      # (C, N)
    p0 = executor.entail_prob(node_features, "concept_0")         # (N,)
    p5 = executor.entail_prob(node_features, "concept_5")         # (N,)
    jax.block_until_ready((masks, p0, p5))
    assert jnp.allclose(masks, ref_probs.T, atol=2e-5, rtol=1e-5)
    assert jnp.allclose(p0, ref_end[:, 0], atol=2e-5, rtol=1e-5)
    assert jnp.allclose(p5, ref_end[:, 5], atol=2e-5, rtol=1e-5)

    # --- non-aligned shapes: exercises padding, multi-step grid, lane chunks ---
    N2, C2 = 384, 20
    feats2 = jax.random.normal(k_f2, (N2, D), jnp.float32)
    ctr2 = jax.random.normal(k_c2, (C2, D), jnp.float32)
    off2 = jax.nn.softplus(jax.random.normal(k_o2, (C2, D), jnp.float32))
    end2 = jax.random.uniform(k_f2, (N2,), jnp.float32)
    probs2, endo2 = scene_program_execute(feats2, ctr2, off2, end2)
    jax.block_until_ready((probs2, endo2))
    ref_p2, ref_e2 = _reference(feats2, ctr2, off2, end2[:, None])
    assert probs2.shape == (C2, N2) and endo2.shape == (C2, N2)
    assert jnp.allclose(probs2, ref_p2.T, atol=2e-5, rtol=1e-5)
    assert jnp.allclose(endo2, ref_e2.T, atol=2e-5, rtol=1e-5)

    print("KERNEL_OK")
</pallas_src>

<mosaic_0001>
module attributes {stable_mosaic.version = 11 : i64} {
  func.func @_kernel_both(%arg0: i32, %arg1: memref<32x128xf32, #tpu.memory_space<vmem>>, %arg2: memref<32x16x128xf32, #tpu.memory_space<vmem>>, %arg3: memref<16x128xf32, #tpu.memory_space<vmem>>, %arg4: memref<1x128xf32, #tpu.memory_space<vmem>>, %arg5: memref<16x128xf32, #tpu.memory_space<vmem>>, %arg6: memref<16x128xf32, #tpu.memory_space<vmem>>) attributes {dimension_semantics = [#tpu.dimension_semantics<parallel>], iteration_bounds = array<i64: 1>, scalar_prefetch = 0 : i64, scratch_operands = 0 : i64, tpu.core_type = #tpu.core_type<tc>, window_params = [{transform_indices = @transform_0, window_bounds = array<i64: 32, 128>}, {pipeline_mode = #tpu.pipeline_mode<synchronous>, transform_indices = @transform_1, window_bounds = array<i64: 32, 16, 128>}, {pipeline_mode = #tpu.pipeline_mode<synchronous>, transform_indices = @transform_2, window_bounds = array<i64: 16, 128>}, {transform_indices = @transform_3, window_bounds = array<i64: 1, 128>}, {transform_indices = @transform_4, window_bounds = array<i64: 16, 128>}, {transform_indices = @transform_5, window_bounds = array<i64: 16, 128>}]} {
    %cst = arith.constant 0.000000e+00 : f32
    %0 = vector.broadcast %cst : f32 to vector<16x128xf32>
    %c0 = arith.constant 0 : index
    %c0_0 = arith.constant 0 : index
    %1 = vector.load %arg1[%c0, %c0_0] : memref<32x128xf32, #tpu.memory_space<vmem>>, vector<1x128xf32>
    %c0_1 = arith.constant 0 : index
    %c0_2 = arith.constant 0 : index
    %c0_3 = arith.constant 0 : index
    %2 = vector.load %arg2[%c0_1, %c0_2, %c0_3] : memref<32x16x128xf32, #tpu.memory_space<vmem>>, vector<1x16x128xf32>
    %3 = vector.shape_cast %2 : vector<1x16x128xf32> to vector<16x128xf32>
    %4 = vector.broadcast %1 : vector<1x128xf32> to vector<16x128xf32>
    %5 = arith.subf %3, %4 : vector<16x128xf32>
    %6 = math.absf %5 : vector<16x128xf32>
    %7 = arith.addf %0, %6 : vector<16x128xf32>
    %c1 = arith.constant 1 : index
    %c0_4 = arith.constant 0 : index
    %8 = vector.load %arg1[%c1, %c0_4] : memref<32x128xf32, #tpu.memory_space<vmem>>, vector<1x128xf32>
    %c1_5 = arith.constant 1 : index
    %c0_6 = arith.constant 0 : index
    %c0_7 = arith.constant 0 : index
    %9 = vector.load %arg2[%c1_5, %c0_6, %c0_7] : memref<32x16x128xf32, #tpu.memory_space<vmem>>, vector<1x16x128xf32>
    %10 = vector.shape_cast %9 : vector<1x16x128xf32> to vector<16x128xf32>
    %11 = vector.broadcast %8 : vector<1x128xf32> to vector<16x128xf32>
    %12 = arith.subf %10, %11 : vector<16x128xf32>
    %13 = math.absf %12 : vector<16x128xf32>
    %14 = arith.addf %7, %13 : vector<16x128xf32>
    %c2 = arith.constant 2 : index
    %c0_8 = arith.constant 0 : index
    %15 = vector.load %arg1[%c2, %c0_8] : memref<32x128xf32, #tpu.memory_space<vmem>>, vector<1x128xf32>
    %c2_9 = arith.constant 2 : index
    %c0_10 = arith.constant 0 : index
    %c0_11 = arith.constant 0 : index
    %16 = vector.load %arg2[%c2_9, %c0_10, %c0_11] : memref<32x16x128xf32, #tpu.memory_space<vmem>>, vector<1x16x128xf32>
    %17 = vector.shape_cast %16 : vector<1x16x128xf32> to vector<16x128xf32>
    %18 = vector.broadcast %15 : vector<1x128xf32> to vector<16x128xf32>
    %19 = arith.subf %17, %18 : vector<16x128xf32>
    %20 = math.absf %19 : vector<16x128xf32>
    %21 = arith.addf %14, %20 : vector<16x128xf32>
    %c3 = arith.constant 3 : index
    %c0_12 = arith.constant 0 : index
    %22 = vector.load %arg1[%c3, %c0_12] : memref<32x128xf32, #tpu.memory_space<vmem>>, vector<1x128xf32>
    %c3_13 = arith.constant 3 : index
    %c0_14 = arith.constant 0 : index
    %c0_15 = arith.constant 0 : index
    %23 = vector.load %arg2[%c3_13, %c0_14, %c0_15] : memref<32x16x128xf32, #tpu.memory_space<vmem>>, vector<1x16x128xf32>
    %24 = vector.shape_cast %23 : vector<1x16x128xf32> to vector<16x128xf32>
    %25 = vector.broadcast %22 : vector<1x128xf32> to vector<16x128xf32>
    %26 = arith.subf %24, %25 : vector<16x128xf32>
    %27 = math.absf %26 : vector<16x128xf32>
    %28 = arith.addf %21, %27 : vector<16x128xf32>
    %c4 = arith.constant 4 : index
    %c0_16 = arith.constant 0 : index
    %29 = vector.load %arg1[%c4, %c0_16] : memref<32x128xf32, #tpu.memory_space<vmem>>, vector<1x128xf32>
    %c4_17 = arith.constant 4 : index
    %c0_18 = arith.constant 0 : index
    %c0_19 = arith.constant 0 : index
    %30 = vector.load %arg2[%c4_17, %c0_18, %c0_19] : memref<32x16x128xf32, #tpu.memory_space<vmem>>, vector<1x16x128xf32>
    %31 = vector.shape_cast %30 : vector<1x16x128xf32> to vector<16x128xf32>
    %32 = vector.broadcast %29 : vector<1x128xf32> to vector<16x128xf32>
    %33 = arith.subf %31, %32 : vector<16x128xf32>
    %34 = math.absf %33 : vector<16x128xf32>
    %35 = arith.addf %28, %34 : vector<16x128xf32>
    %c5 = arith.constant 5 : index
    %c0_20 = arith.constant 0 : index
    %36 = vector.load %arg1[%c5, %c0_20] : memref<32x128xf32, #tpu.memory_space<vmem>>, vector<1x128xf32>
    %c5_21 = arith.constant 5 : index
    %c0_22 = arith.constant 0 : index
    %c0_23 = arith.constant 0 : index
    %37 = vector.load %arg2[%c5_21, %c0_22, %c0_23] : memref<32x16x128xf32, #tpu.memory_space<vmem>>, vector<1x16x128xf32>
    %38 = vector.shape_cast %37 : vector<1x16x128xf32> to vector<16x128xf32>
    %39 = vector.broadcast %36 : vector<1x128xf32> to vector<16x128xf32>
    %40 = arith.subf %38, %39 : vector<16x128xf32>
    %41 = math.absf %40 : vector<16x128xf32>
    %42 = arith.addf %35, %41 : vector<16x128xf32>
    %c6 = arith.constant 6 : index
    %c0_24 = arith.constant 0 : index
    %43 = vector.load %arg1[%c6, %c0_24] : memref<32x128xf32, #tpu.memory_space<vmem>>, vector<1x128xf32>
    %c6_25 = arith.constant 6 : index
    %c0_26 = arith.constant 0 : index
    %c0_27 = arith.constant 0 : index
    %44 = vector.load %arg2[%c6_25, %c0_26, %c0_27] : memref<32x16x128xf32, #tpu.memory_space<vmem>>, vector<1x16x128xf32>
    %45 = vector.shape_cast %44 : vector<1x16x128xf32> to vector<16x128xf32>
    %46 = vector.broadcast %43 : vector<1x128xf32> to vector<16x128xf32>
    %47 = arith.subf %45, %46 : vector<16x128xf32>
    %48 = math.absf %47 : vector<16x128xf32>
    %49 = arith.addf %42, %48 : vector<16x128xf32>
    %c7 = arith.constant 7 : index
    %c0_28 = arith.constant 0 : index
    %50 = vector.load %arg1[%c7, %c0_28] : memref<32x128xf32, #tpu.memory_space<vmem>>, vector<1x128xf32>
    %c7_29 = arith.constant 7 : index
    %c0_30 = arith.constant 0 : index
    %c0_31 = arith.constant 0 : index
    %51 = vector.load %arg2[%c7_29, %c0_30, %c0_31] : memref<32x16x128xf32, #tpu.memory_space<vmem>>, vector<1x16x128xf32>
    %52 = vector.shape_cast %51 : vector<1x16x128xf32> to vector<16x128xf32>
    %53 = vector.broadcast %50 : vector<1x128xf32> to vector<16x128xf32>
    %54 = arith.subf %52, %53 : vector<16x128xf32>
    %55 = math.absf %54 : vector<16x128xf32>
    %56 = arith.addf %49, %55 : vector<16x128xf32>
    %c8 = arith.constant 8 : index
    %c0_32 = arith.constant 0 : index
    %57 = vector.load %arg1[%c8, %c0_32] : memref<32x128xf32, #tpu.memory_space<vmem>>, vector<1x128xf32>
    %c8_33 = arith.constant 8 : index
    %c0_34 = arith.constant 0 : index
    %c0_35 = arith.constant 0 : index
    %58 = vector.load %arg2[%c8_33, %c0_34, %c0_35] : memref<32x16x128xf32, #tpu.memory_space<vmem>>, vector<1x16x128xf32>
    %59 = vector.shape_cast %58 : vector<1x16x128xf32> to vector<16x128xf32>
    %60 = vector.broadcast %57 : vector<1x128xf32> to vector<16x128xf32>
    %61 = arith.subf %59, %60 : vector<16x128xf32>
    %62 = math.absf %61 : vector<16x128xf32>
    %63 = arith.addf %56, %62 : vector<16x128xf32>
    %c9 = arith.constant 9 : index
    %c0_36 = arith.constant 0 : index
    %64 = vector.load %arg1[%c9, %c0_36] : memref<32x128xf32, #tpu.memory_space<vmem>>, vector<1x128xf32>
    %c9_37 = arith.constant 9 : index
    %c0_38 = arith.constant 0 : index
    %c0_39 = arith.constant 0 : index
    %65 = vector.load %arg2[%c9_37, %c0_38, %c0_39] : memref<32x16x128xf32, #tpu.memory_space<vmem>>, vector<1x16x128xf32>
    %66 = vector.shape_cast %65 : vector<1x16x128xf32> to vector<16x128xf32>
    %67 = vector.broadcast %64 : vector<1x128xf32> to vector<16x128xf32>
    %68 = arith.subf %66, %67 : vector<16x128xf32>
    %69 = math.absf %68 : vector<16x128xf32>
    %70 = arith.addf %63, %69 : vector<16x128xf32>
    %c10 = arith.constant 10 : index
    %c0_40 = arith.constant 0 : index
    %71 = vector.load %arg1[%c10, %c0_40] : memref<32x128xf32, #tpu.memory_space<vmem>>, vector<1x128xf32>
    %c10_41 = arith.constant 10 : index
    %c0_42 = arith.constant 0 : index
    %c0_43 = arith.constant 0 : index
    %72 = vector.load %arg2[%c10_41, %c0_42, %c0_43] : memref<32x16x128xf32, #tpu.memory_space<vmem>>, vector<1x16x128xf32>
    %73 = vector.shape_cast %72 : vector<1x16x128xf32> to vector<16x128xf32>
    %74 = vector.broadcast %71 : vector<1x128xf32> to vector<16x128xf32>
    %75 = arith.subf %73, %74 : vector<16x128xf32>
    %76 = math.absf %75 : vector<16x128xf32>
    %77 = arith.addf %70, %76 : vector<16x128xf32>
    %c11 = arith.constant 11 : index
    %c0_44 = arith.constant 0 : index
    %78 = vector.load %arg1[%c11, %c0_44] : memref<32x128xf32, #tpu.memory_space<vmem>>, vector<1x128xf32>
    %c11_45 = arith.constant 11 : index
    %c0_46 = arith.constant 0 : index
    %c0_47 = arith.constant 0 : index
    %79 = vector.load %arg2[%c11_45, %c0_46, %c0_47] : memref<32x16x128xf32, #tpu.memory_space<vmem>>, vector<1x16x128xf32>
    %80 = vector.shape_cast %79 : vector<1x16x128xf32> to vector<16x128xf32>
    %81 = vector.broadcast %78 : vector<1x128xf32> to vector<16x128xf32>
    %82 = arith.subf %80, %81 : vector<16x128xf32>
    %83 = math.absf %82 : vector<16x128xf32>
    %84 = arith.addf %77, %83 : vector<16x128xf32>
    %c12 = arith.constant 12 : index
    %c0_48 = arith.constant 0 : index
    %85 = vector.load %arg1[%c12, %c0_48] : memref<32x128xf32, #tpu.memory_space<vmem>>, vector<1x128xf32>
    %c12_49 = arith.constant 12 : index
    %c0_50 = arith.constant 0 : index
    %c0_51 = arith.constant 0 : index
    %86 = vector.load %arg2[%c12_49, %c0_50, %c0_51] : memref<32x16x128xf32, #tpu.memory_space<vmem>>, vector<1x16x128xf32>
    %87 = vector.shape_cast %86 : vector<1x16x128xf32> to vector<16x128xf32>
    %88 = vector.broadcast %85 : vector<1x128xf32> to vector<16x128xf32>
    %89 = arith.subf %87, %88 : vector<16x128xf32>
    %90 = math.absf %89 : vector<16x128xf32>
    %91 = arith.addf %84, %90 : vector<16x128xf32>
    %c13 = arith.constant 13 : index
    %c0_52 = arith.constant 0 : index
    %92 = vector.load %arg1[%c13, %c0_52] : memref<32x128xf32, #tpu.memory_space<vmem>>, vector<1x128xf32>
    %c13_53 = arith.constant 13 : index
    %c0_54 = arith.constant 0 : index
    %c0_55 = arith.constant 0 : index
    %93 = vector.load %arg2[%c13_53, %c0_54, %c0_55] : memref<32x16x128xf32, #tpu.memory_space<vmem>>, vector<1x16x128xf32>
    %94 = vector.shape_cast %93 : vector<1x16x128xf32> to vector<16x128xf32>
    %95 = vector.broadcast %92 : vector<1x128xf32> to vector<16x128xf32>
    %96 = arith.subf %94, %95 : vector<16x128xf32>
    %97 = math.absf %96 : vector<16x128xf32>
    %98 = arith.addf %91, %97 : vector<16x128xf32>
    %c14 = arith.constant 14 : index
    %c0_56 = arith.constant 0 : index
    %99 = vector.load %arg1[%c14, %c0_56] : memref<32x128xf32, #tpu.memory_space<vmem>>, vector<1x128xf32>
    %c14_57 = arith.constant 14 : index
    %c0_58 = arith.constant 0 : index
    %c0_59 = arith.constant 0 : index
    %100 = vector.load %arg2[%c14_57, %c0_58, %c0_59] : memref<32x16x128xf32, #tpu.memory_space<vmem>>, vector<1x16x128xf32>
    %101 = vector.shape_cast %100 : vector<1x16x128xf32> to vector<16x128xf32>
    %102 = vector.broadcast %99 : vector<1x128xf32> to vector<16x128xf32>
    %103 = arith.subf %101, %102 : vector<16x128xf32>
    %104 = math.absf %103 : vector<16x128xf32>
    %105 = arith.addf %98, %104 : vector<16x128xf32>
    %c15 = arith.constant 15 : index
    %c0_60 = arith.constant 0 : index
    %106 = vector.load %arg1[%c15, %c0_60] : memref<32x128xf32, #tpu.memory_space<vmem>>, vector<1x128xf32>
    %c15_61 = arith.constant 15 : index
    %c0_62 = arith.constant 0 : index
    %c0_63 = arith.constant 0 : index
    %107 = vector.load %arg2[%c15_61, %c0_62, %c0_63] : memref<32x16x128xf32, #tpu.memory_space<vmem>>, vector<1x16x128xf32>
    %108 = vector.shape_cast %107 : vector<1x16x128xf32> to vector<16x128xf32>
    %109 = vector.broadcast %106 : vector<1x128xf32> to vector<16x128xf32>
    %110 = arith.subf %108, %109 : vector<16x128xf32>
    %111 = math.absf %110 : vector<16x128xf32>
    %112 = arith.addf %105, %111 : vector<16x128xf32>
    %c16 = arith.constant 16 : index
    %c0_64 = arith.constant 0 : index
    %113 = vector.load %arg1[%c16, %c0_64] : memref<32x128xf32, #tpu.memory_space<vmem>>, vector<1x128xf32>
    %c16_65 = arith.constant 16 : index
    %c0_66 = arith.constant 0 : index
    %c0_67 = arith.constant 0 : index
    %114 = vector.load %arg2[%c16_65, %c0_66, %c0_67] : memref<32x16x128xf32, #tpu.memory_space<vmem>>, vector<1x16x128xf32>
    %115 = vector.shape_cast %114 : vector<1x16x128xf32> to vector<16x128xf32>
    %116 = vector.broadcast %113 : vector<1x128xf32> to vector<16x128xf32>
    %117 = arith.subf %115, %116 : vector<16x128xf32>
    %118 = math.absf %117 : vector<16x128xf32>
    %119 = arith.addf %112, %118 : vector<16x128xf32>
    %c17 = arith.constant 17 : index
    %c0_68 = arith.constant 0 : index
    %120 = vector.load %arg1[%c17, %c0_68] : memref<32x128xf32, #tpu.memory_space<vmem>>, vector<1x128xf32>
    %c17_69 = arith.constant 17 : index
    %c0_70 = arith.constant 0 : index
    %c0_71 = arith.constant 0 : index
    %121 = vector.load %arg2[%c17_69, %c0_70, %c0_71] : memref<32x16x128xf32, #tpu.memory_space<vmem>>, vector<1x16x128xf32>
    %122 = vector.shape_cast %121 : vector<1x16x128xf32> to vector<16x128xf32>
    %123 = vector.broadcast %120 : vector<1x128xf32> to vector<16x128xf32>
    %124 = arith.subf %122, %123 : vector<16x128xf32>
    %125 = math.absf %124 : vector<16x128xf32>
    %126 = arith.addf %119, %125 : vector<16x128xf32>
    %c18 = arith.constant 18 : index
    %c0_72 = arith.constant 0 : index
    %127 = vector.load %arg1[%c18, %c0_72] : memref<32x128xf32, #tpu.memory_space<vmem>>, vector<1x128xf32>
    %c18_73 = arith.constant 18 : index
    %c0_74 = arith.constant 0 : index
    %c0_75 = arith.constant 0 : index
    %128 = vector.load %arg2[%c18_73, %c0_74, %c0_75] : memref<32x16x128xf32, #tpu.memory_space<vmem>>, vector<1x16x128xf32>
    %129 = vector.shape_cast %128 : vector<1x16x128xf32> to vector<16x128xf32>
    %130 = vector.broadcast %127 : vector<1x128xf32> to vector<16x128xf32>
    %131 = arith.subf %129, %130 : vector<16x128xf32>
    %132 = math.absf %131 : vector<16x128xf32>
    %133 = arith.addf %126, %132 : vector<16x128xf32>
    %c19 = arith.constant 19 : index
    %c0_76 = arith.constant 0 : index
    %134 = vector.load %arg1[%c19, %c0_76] : memref<32x128xf32, #tpu.memory_space<vmem>>, vector<1x128xf32>
    %c19_77 = arith.constant 19 : index
    %c0_78 = arith.constant 0 : index
    %c0_79 = arith.constant 0 : index
    %135 = vector.load %arg2[%c19_77, %c0_78, %c0_79] : memref<32x16x128xf32, #tpu.memory_space<vmem>>, vector<1x16x128xf32>
    %136 = vector.shape_cast %135 : vector<1x16x128xf32> to vector<16x128xf32>
    %137 = vector.broadcast %134 : vector<1x128xf32> to vector<16x128xf32>
    %138 = arith.subf %136, %137 : vector<16x128xf32>
    %139 = math.absf %138 : vector<16x128xf32>
    %140 = arith.addf %133, %139 : vector<16x128xf32>
    %c20 = arith.constant 20 : index
    %c0_80 = arith.constant 0 : index
    %141 = vector.load %arg1[%c20, %c0_80] : memref<32x128xf32, #tpu.memory_space<vmem>>, vector<1x128xf32>
    %c20_81 = arith.constant 20 : index
    %c0_82 = arith.constant 0 : index
    %c0_83 = arith.constant 0 : index
    %142 = vector.load %arg2[%c20_81, %c0_82, %c0_83] : memref<32x16x128xf32, #tpu.memory_space<vmem>>, vector<1x16x128xf32>
    %143 = vector.shape_cast %142 : vector<1x16x128xf32> to vector<16x128xf32>
    %144 = vector.broadcast %141 : vector<1x128xf32> to vector<16x128xf32>
    %145 = arith.subf %143, %144 : vector<16x128xf32>
    %146 = math.absf %145 : vector<16x128xf32>
    %147 = arith.addf %140, %146 : vector<16x128xf32>
    %c21 = arith.constant 21 : index
    %c0_84 = arith.constant 0 : index
    %148 = vector.load %arg1[%c21, %c0_84] : memref<32x128xf32, #tpu.memory_space<vmem>>, vector<1x128xf32>
    %c21_85 = arith.constant 21 : index
    %c0_86 = arith.constant 0 : index
    %c0_87 = arith.constant 0 : index
    %149 = vector.load %arg2[%c21_85, %c0_86, %c0_87] : memref<32x16x128xf32, #tpu.memory_space<vmem>>, vector<1x16x128xf32>
    %150 = vector.shape_cast %149 : vector<1x16x128xf32> to vector<16x128xf32>
    %151 = vector.broadcast %148 : vector<1x128xf32> to vector<16x128xf32>
    %152 = arith.subf %150, %151 : vector<16x128xf32>
    %153 = math.absf %152 : vector<16x128xf32>
    %154 = arith.addf %147, %153 : vector<16x128xf32>
    %c22 = arith.constant 22 : index
    %c0_88 = arith.constant 0 : index
    %155 = vector.load %arg1[%c22, %c0_88] : memref<32x128xf32, #tpu.memory_space<vmem>>, vector<1x128xf32>
    %c22_89 = arith.constant 22 : index
    %c0_90 = arith.constant 0 : index
    %c0_91 = arith.constant 0 : index
    %156 = vector.load %arg2[%c22_89, %c0_90, %c0_91] : memref<32x16x128xf32, #tpu.memory_space<vmem>>, vector<1x16x128xf32>
    %157 = vector.shape_cast %156 : vector<1x16x128xf32> to vector<16x128xf32>
    %158 = vector.broadcast %155 : vector<1x128xf32> to vector<16x128xf32>
    %159 = arith.subf %157, %158 : vector<16x128xf32>
    %160 = math.absf %159 : vector<16x128xf32>
    %161 = arith.addf %154, %160 : vector<16x128xf32>
    %c23 = arith.constant 23 : index
    %c0_92 = arith.constant 0 : index
    %162 = vector.load %arg1[%c23, %c0_92] : memref<32x128xf32, #tpu.memory_space<vmem>>, vector<1x128xf32>
    %c23_93 = arith.constant 23 : index
    %c0_94 = arith.constant 0 : index
    %c0_95 = arith.constant 0 : index
    %163 = vector.load %arg2[%c23_93, %c0_94, %c0_95] : memref<32x16x128xf32, #tpu.memory_space<vmem>>, vector<1x16x128xf32>
    %164 = vector.shape_cast %163 : vector<1x16x128xf32> to vector<16x128xf32>
    %165 = vector.broadcast %162 : vector<1x128xf32> to vector<16x128xf32>
    %166 = arith.subf %164, %165 : vector<16x128xf32>
    %167 = math.absf %166 : vector<16x128xf32>
    %168 = arith.addf %161, %167 : vector<16x128xf32>
    %c24 = arith.constant 24 : index
    %c0_96 = arith.constant 0 : index
    %169 = vector.load %arg1[%c24, %c0_96] : memref<32x128xf32, #tpu.memory_space<vmem>>, vector<1x128xf32>
    %c24_97 = arith.constant 24 : index
    %c0_98 = arith.constant 0 : index
    %c0_99 = arith.constant 0 : index
    %170 = vector.load %arg2[%c24_97, %c0_98, %c0_99] : memref<32x16x128xf32, #tpu.memory_space<vmem>>, vector<1x16x128xf32>
    %171 = vector.shape_cast %170 : vector<1x16x128xf32> to vector<16x128xf32>
    %172 = vector.broadcast %169 : vector<1x128xf32> to vector<16x128xf32>
    %173 = arith.subf %171, %172 : vector<16x128xf32>
    %174 = math.absf %173 : vector<16x128xf32>
    %175 = arith.addf %168, %174 : vector<16x128xf32>
    %c25 = arith.constant 25 : index
    %c0_100 = arith.constant 0 : index
    %176 = vector.load %arg1[%c25, %c0_100] : memref<32x128xf32, #tpu.memory_space<vmem>>, vector<1x128xf32>
    %c25_101 = arith.constant 25 : index
    %c0_102 = arith.constant 0 : index
    %c0_103 = arith.constant 0 : index
    %177 = vector.load %arg2[%c25_101, %c0_102, %c0_103] : memref<32x16x128xf32, #tpu.memory_space<vmem>>, vector<1x16x128xf32>
    %178 = vector.shape_cast %177 : vector<1x16x128xf32> to vector<16x128xf32>
    %179 = vector.broadcast %176 : vector<1x128xf32> to vector<16x128xf32>
    %180 = arith.subf %178, %179 : vector<16x128xf32>
    %181 = math.absf %180 : vector<16x128xf32>
    %182 = arith.addf %175, %181 : vector<16x128xf32>
    %c26 = arith.constant 26 : index
    %c0_104 = arith.constant 0 : index
    %183 = vector.load %arg1[%c26, %c0_104] : memref<32x128xf32, #tpu.memory_space<vmem>>, vector<1x128xf32>
    %c26_105 = arith.constant 26 : index
    %c0_106 = arith.constant 0 : index
    %c0_107 = arith.constant 0 : index
    %184 = vector.load %arg2[%c26_105, %c0_106, %c0_107] : memref<32x16x128xf32, #tpu.memory_space<vmem>>, vector<1x16x128xf32>
    %185 = vector.shape_cast %184 : vector<1x16x128xf32> to vector<16x128xf32>
    %186 = vector.broadcast %183 : vector<1x128xf32> to vector<16x128xf32>
    %187 = arith.subf %185, %186 : vector<16x128xf32>
    %188 = math.absf %187 : vector<16x128xf32>
    %189 = arith.addf %182, %188 : vector<16x128xf32>
    %c27 = arith.constant 27 : index
    %c0_108 = arith.constant 0 : index
    %190 = vector.load %arg1[%c27, %c0_108] : memref<32x128xf32, #tpu.memory_space<vmem>>, vector<1x128xf32>
    %c27_109 = arith.constant 27 : index
    %c0_110 = arith.constant 0 : index
    %c0_111 = arith.constant 0 : index
    %191 = vector.load %arg2[%c27_109, %c0_110, %c0_111] : memref<32x16x128xf32, #tpu.memory_space<vmem>>, vector<1x16x128xf32>
    %192 = vector.shape_cast %191 : vector<1x16x128xf32> to vector<16x128xf32>
    %193 = vector.broadcast %190 : vector<1x128xf32> to vector<16x128xf32>
    %194 = arith.subf %192, %193 : vector<16x128xf32>
    %195 = math.absf %194 : vector<16x128xf32>
    %196 = arith.addf %189, %195 : vector<16x128xf32>
    %c28 = arith.constant 28 : index
    %c0_112 = arith.constant 0 : index
    %197 = vector.load %arg1[%c28, %c0_112] : memref<32x128xf32, #tpu.memory_space<vmem>>, vector<1x128xf32>
    %c28_113 = arith.constant 28 : index
    %c0_114 = arith.constant 0 : index
    %c0_115 = arith.constant 0 : index
    %198 = vector.load %arg2[%c28_113, %c0_114, %c0_115] : memref<32x16x128xf32, #tpu.memory_space<vmem>>, vector<1x16x128xf32>
    %199 = vector.shape_cast %198 : vector<1x16x128xf32> to vector<16x128xf32>
    %200 = vector.broadcast %197 : vector<1x128xf32> to vector<16x128xf32>
    %201 = arith.subf %199, %200 : vector<16x128xf32>
    %202 = math.absf %201 : vector<16x128xf32>
    %203 = arith.addf %196, %202 : vector<16x128xf32>
    %c29 = arith.constant 29 : index
    %c0_116 = arith.constant 0 : index
    %204 = vector.load %arg1[%c29, %c0_116] : memref<32x128xf32, #tpu.memory_space<vmem>>, vector<1x128xf32>
    %c29_117 = arith.constant 29 : index
    %c0_118 = arith.constant 0 : index
    %c0_119 = arith.constant 0 : index
    %205 = vector.load %arg2[%c29_117, %c0_118, %c0_119] : memref<32x16x128xf32, #tpu.memory_space<vmem>>, vector<1x16x128xf32>
    %206 = vector.shape_cast %205 : vector<1x16x128xf32> to vector<16x128xf32>
    %207 = vector.broadcast %204 : vector<1x128xf32> to vector<16x128xf32>
    %208 = arith.subf %206, %207 : vector<16x128xf32>
    %209 = math.absf %208 : vector<16x128xf32>
    %210 = arith.addf %203, %209 : vector<16x128xf32>
    %c30 = arith.constant 30 : index
    %c0_120 = arith.constant 0 : index
    %211 = vector.load %arg1[%c30, %c0_120] : memref<32x128xf32, #tpu.memory_space<vmem>>, vector<1x128xf32>
    %c30_121 = arith.constant 30 : index
    %c0_122 = arith.constant 0 : index
    %c0_123 = arith.constant 0 : index
    %212 = vector.load %arg2[%c30_121, %c0_122, %c0_123] : memref<32x16x128xf32, #tpu.memory_space<vmem>>, vector<1x16x128xf32>
    %213 = vector.shape_cast %212 : vector<1x16x128xf32> to vector<16x128xf32>
    %214 = vector.broadcast %211 : vector<1x128xf32> to vector<16x128xf32>
    %215 = arith.subf %213, %214 : vector<16x128xf32>
    %216 = math.absf %215 : vector<16x128xf32>
    %217 = arith.addf %210, %216 : vector<16x128xf32>
    %c31 = arith.constant 31 : index
    %c0_124 = arith.constant 0 : index
    %218 = vector.load %arg1[%c31, %c0_124] : memref<32x128xf32, #tpu.memory_space<vmem>>, vector<1x128xf32>
    %c31_125 = arith.constant 31 : index
    %c0_126 = arith.constant 0 : index
    %c0_127 = arith.constant 0 : index
    %219 = vector.load %arg2[%c31_125, %c0_126, %c0_127] : memref<32x16x128xf32, #tpu.memory_space<vmem>>, vector<1x16x128xf32>
    %220 = vector.shape_cast %219 : vector<1x16x128xf32> to vector<16x128xf32>
    %221 = vector.broadcast %218 : vector<1x128xf32> to vector<16x128xf32>
    %222 = arith.subf %220, %221 : vector<16x128xf32>
    %223 = math.absf %222 : vector<16x128xf32>
    %224 = arith.addf %217, %223 : vector<16x128xf32>
    %c0_128 = arith.constant 0 : index
    %c0_129 = arith.constant 0 : index
    %225 = vector.load %arg3[%c0_128, %c0_129] : memref<16x128xf32, #tpu.memory_space<vmem>>, vector<16x128xf32>
    %226 = arith.subf %225, %224 : vector<16x128xf32>
    %cst_130 = arith.constant 4.000000e+00 : f32
    %227 = vector.broadcast %cst_130 : f32 to vector<16x128xf32>
    %228 = arith.mulf %226, %227 : vector<16x128xf32>
    %229 = arith.negf %228 : vector<16x128xf32>
    %230 = math.exp %229 : vector<16x128xf32>
    %cst_131 = arith.constant 1.000000e+00 : f32
    %231 = vector.broadcast %cst_131 : f32 to vector<16x128xf32>
    %232 = arith.addf %231, %230 : vector<16x128xf32>
    %233 = arith.divf %231, %232 : vector<16x128xf32>
    %c0_132 = arith.constant 0 : index
    %c0_133 = arith.constant 0 : index
    %234 = vector.load %arg5[%c0_132, %c0_133] : memref<16x128xf32, #tpu.memory_space<vmem>>, vector<16x128xf32>
    tpu.vector_store %arg5[%c0_132, %c0_133], %233 {strides = array<i32>} : memref<16x128xf32, #tpu.memory_space<vmem>>, vector<16x128xf32>,
    %c0_134 = arith.constant 0 : index
    %c0_135 = arith.constant 0 : index
    %235 = vector.load %arg4[%c0_134, %c0_135] : memref<1x128xf32, #tpu.memory_space<vmem>>, vector<1x128xf32>
    %236 = vector.broadcast %235 : vector<1x128xf32> to vector<16x128xf32>
    %237 = arith.mulf %236, %233 : vector<16x128xf32>
    %c0_136 = arith.constant 0 : index
    %c0_137 = arith.constant 0 : index
    %238 = vector.load %arg6[%c0_136, %c0_137] : memref<16x128xf32, #tpu.memory_space<vmem>>, vector<16x128xf32>
    tpu.vector_store %arg6[%c0_136, %c0_137], %237 {strides = array<i32>} : memref<16x128xf32, #tpu.memory_space<vmem>>, vector<16x128xf32>,
    return
  }
  func.func @transform_0(%arg0: i32) -> (i32, i32) {
    %c0_i32 = arith.constant 0 : i32
    %c0_i32_0 = arith.constant 0 : i32
    return %c0_i32, %arg0 : i32, i32
  }
  func.func @transform_1(%arg0: i32) -> (i32, i32, i32) {
    %c0_i32 = arith.constant 0 : i32
    %c0_i32_0 = arith.constant 0 : i32
    %c0_i32_1 = arith.constant 0 : i32
    %c0_i32_2 = arith.constant 0 : i32
    return %c0_i32, %c0_i32_0, %c0_i32_1 : i32, i32, i32
  }
  func.func @transform_2(%arg0: i32) -> (i32, i32) {
    %c0_i32 = arith.constant 0 : i32
    %c0_i32_0 = arith.constant 0 : i32
    %c0_i32_1 = arith.constant 0 : i32
    return %c0_i32, %c0_i32_0 : i32, i32
  }
  func.func @transform_3(%arg0: i32) -> (i32, i32) {
    %c0_i32 = arith.constant 0 : i32
    %c0_i32_0 = arith.constant 0 : i32
    return %c0_i32, %arg0 : i32, i32
  }
  func.func @transform_4(%arg0: i32) -> (i32, i32) {
    %c0_i32 = arith.constant 0 : i32
    %c0_i32_0 = arith.constant 0 : i32
    return %c0_i32, %arg0 : i32, i32
  }
  func.func @transform_5(%arg0: i32) -> (i32, i32) {
    %c0_i32 = arith.constant 0 : i32
    %c0_i32_0 = arith.constant 0 : i32
    return %c0_i32, %arg0 : i32, i32
  }
}

</mosaic_0001>

<llo_original>
// kernel: _execute.1
$region0: #{_execute.1}
  #allocation0 [shape = 'u32[]', space=smem, size = 0x4, offset = 0x4, fixed_abs, tag = 'smem constant byte address 0x4 - core index']
  #allocation1 [shape = 'u32[144,128]{1,0:T(1,128)}', space=vmem, size = 0x12000, scoped, tag = 'internal scratch']
  %s0 = inlined_call_operand.vmem [shape: f32[32,128], index: 0, kind: input, shape index: {}]
  %s1 = inlined_call_operand.hbm [shape: f32[32,16,128], index: 1, kind: input, shape index: {}]
  %s2 = inlined_call_operand.vmem [shape: f32[16,128], index: 2, kind: input, shape index: {}]
  %s3 = inlined_call_operand.vmem [shape: f32[1,128], index: 3, kind: input, shape index: {}]
  %s4 = inlined_call_operand.hbm [shape: f32[16,128], index: 4, kind: output, shape index: {0}]
  %s5 = inlined_call_operand.hbm [shape: f32[16,128], index: 5, kind: output, shape index: {1}]
  %6 = xla_tuple %s4, %s5
  %s7 = sld [smem:[#allocation0]]
  $region38: #{_execute.1} parent=0
    _
  %s9 = ssub.s32 1, %s7
  %s10 = scalar_select 0, %s9, %s7
  $region1: #{_execute.1} parent=0
    #allocation2 [shape = 'u8[262144]{0}', space=vmem, size = 0x40000, scoped, tag = 'input window, operand 1, single buffered']
    #allocation3 [shape = 's32[1]{0}', space=sflag, size = 0x4, scoped, tag = 'scoped memory for _execute.1']
    #allocation4 [shape = 's32[1]{0}', space=sflag, size = 0x4, scoped, tag = 'scoped memory for _execute.1']
    #allocation5 [shape = 'u8[8192]{0}', space=vmem, size = 0x2000, scoped, tag = 'output window, operand 0, single buffered']
    #allocation6 [shape = 'u8[8192]{0}', space=vmem, size = 0x2000, scoped, tag = 'output window, operand 1, single buffered']
    #allocation7 [shape = 's32[1]{0}', space=sflag, size = 0x4, scoped, tag = 'scoped memory for _execute.1']
    %11 = vsyncpa [#allocation3], 0
    %12 = vsyncpa [#allocation4], 0
    %13 = vsyncpa [#allocation7], 0
    // Predicated region
    $region2: #{_execute.1} parent=1 // pred_check
      _
    $region3: #{_execute.1} parent=1 // pred_check_branch
      %15 = sbr.rel (0) target = $region5
    $region4: #{_execute.1} parent=1 // pred_region
      _
    $region5: #{_execute.1} parent=1 // pred_fallthru
      _
    // Predicated region
    $region6: #{_execute.1} parent=1 // pred_check
      _
    $region7: #{_execute.1} parent=1 // pred_check_branch
      %17 = sbr.rel (0) target = $region9
    $region8: #{_execute.1} parent=1 // pred_region
      %s19 = ssub.s32 8192, 8192
      %20 = vsyncadd [#allocation3], %s19
      %s21 = sshll.u32 [#allocation2], 4
      %s22 = int_to_ptr.vmem [resolvable:$true] %s21
      %27 = dma.hbm_to_vmem [thread:$0]  %s1, 8192, %s22, [#allocation3], 128, 128, 8
    $region9: #{_execute.1} parent=1 // pred_fallthru
      _
    // Predicated region
    $region10: #{_execute.1} parent=1 // pred_check
      _
    $region11: #{_execute.1} parent=1 // pred_check_branch
      %29 = sbr.rel (0) target = $region13
    $region12: #{_execute.1} parent=1 // pred_region
      _
    $region13: #{_execute.1} parent=1 // pred_fallthru
      _
    // Predicated region
    $region14: #{_execute.1} parent=1 // pred_check
      _
    $region15: #{_execute.1} parent=1 // pred_check_branch
      %31 = sbr.rel (0) target = $region17
    $region16: #{_execute.1} parent=1 // pred_region
      _
    $region17: #{_execute.1} parent=1 // pred_fallthru
      _
    // Predicated region
    $region18: #{_execute.1} parent=1 // pred_check
      _
    $region19: #{_execute.1} parent=1 // pred_check_branch
      %33 = sbr.rel (0) target = $region21
    $region20: #{_execute.1} parent=1 // pred_region
      %34 = dma.done [#allocation3], 8192
    $region21: #{_execute.1} parent=1 // pred_fallthru
      _
    %v35 = vld [vmem:[%s0] sm:$0x1]
    %v36 = vld [vmem:[#allocation2] sm:$0xff]
    %v37 = vld [vmem:[#allocation2 + $0x8] sm:$0xff]
    %v38 = vlaneseq
    %v39 = vshrl.u32 %v38, 7
    %v40 = vsub.s32 0, %v39
    %v41 = vrot.slane %v35, %v40
    %v42 = vsub.f32 %v36, %v41
    %v43 = vsub.f32 %v37, %v41
    %v44 = vand.u32 2147483647, %v42
    %v45 = vand.u32 2147483647, %v43
    %v46 = vadd.f32 %v44, 0.0
    %v47 = vadd.f32 %v45, 0.0
    %v48 = vld [vmem:[%s0 + $0x1] sm:$0x1]
    %s49 = scalar_lea.vmem [#allocation2], 16
    %v50 = vld [vmem:[%s49] sm:$0xff]
    %v51 = vld [vmem:[%s49 + $0x8] sm:$0xff]
    %v52 = vlaneseq
    %v53 = vshrl.u32 %v52, 7
    %v54 = vsub.s32 0, %v53
    %v55 = vrot.slane %v48, %v54
    %v56 = vsub.f32 %v50, %v55
    %v57 = vsub.f32 %v51, %v55
    %v58 = vand.u32 2147483647, %v56
    %v59 = vand.u32 2147483647, %v57
    %v60 = vadd.f32 %v46, %v58
    %v61 = vadd.f32 %v47, %v59
    %v62 = vld [vmem:[%s0 + $0x2] sm:$0x1]
    %s63 = scalar_lea.vmem [#allocation2], 32
    %v64 = vld [vmem:[%s63] sm:$0xff]
    %v65 = vld [vmem:[%s63 + $0x8] sm:$0xff]
    %v66 = vlaneseq
    %v67 = vshrl.u32 %v66, 7
    %v68 = vsub.s32 0, %v67
    %v69 = vrot.slane %v62, %v68
    %v70 = vsub.f32 %v64, %v69
    %v71 = vsub.f32 %v65, %v69
    %v72 = vand.u32 2147483647, %v70
    %v73 = vand.u32 2147483647, %v71
    %v74 = vadd.f32 %v60, %v72
    %v75 = vadd.f32 %v61, %v73
    %v76 = vld [vmem:[%s0 + $0x3] sm:$0x1]
    %s77 = scalar_lea.vmem [#allocation2], 48
    %v78 = vld [vmem:[%s77] sm:$0xff]
    %v79 = vld [vmem:[%s77 + $0x8] sm:$0xff]
    %v80 = vlaneseq
    %v81 = vshrl.u32 %v80, 7
    %v82 = vsub.s32 0, %v81
    %v83 = vrot.slane %v76, %v82
    %v84 = vsub.f32 %v78, %v83
    %v85 = vsub.f32 %v79, %v83
    %v86 = vand.u32 2147483647, %v84
    %v87 = vand.u32 2147483647, %v85
    %v88 = vadd.f32 %v74, %v86
    %v89 = vadd.f32 %v75, %v87
    %v90 = vld [vmem:[%s0 + $0x4] sm:$0x1]
    %s91 = scalar_lea.vmem [#allocation2], 64
    %v92 = vld [vmem:[%s91] sm:$0xff]
    %v93 = vld [vmem:[%s91 + $0x8] sm:$0xff]
    %v94 = vlaneseq
    %v95 = vshrl.u32 %v94, 7
    %v96 = vsub.s32 0, %v95
    %v97 = vrot.slane %v90, %v96
    %v98 = vsub.f32 %v92, %v97
    %v99 = vsub.f32 %v93, %v97
    %v100 = vand.u32 2147483647, %v98
    %v101 = vand.u32 2147483647, %v99
    %v102 = vadd.f32 %v88, %v100
    %v103 = vadd.f32 %v89, %v101
    %v104 = vld [vmem:[%s0 + $0x5] sm:$0x1]
    %s105 = scalar_lea.vmem [#allocation2], 80
    %v106 = vld [vmem:[%s105] sm:$0xff]
    %v107 = vld [vmem:[%s105 + $0x8] sm:$0xff]
    %v108 = vlaneseq
    %v109 = vshrl.u32 %v108, 7
    %v110 = vsub.s32 0, %v109
    %v111 = vrot.slane %v104, %v110
    %v112 = vsub.f32 %v106, %v111
    %v113 = vsub.f32 %v107, %v111
    %v114 = vand.u32 2147483647, %v112
    %v115 = vand.u32 2147483647, %v113
    %v116 = vadd.f32 %v102, %v114
    %v117 = vadd.f32 %v103, %v115
    %v118 = vld [vmem:[%s0 + $0x6] sm:$0x1]
    %s119 = scalar_lea.vmem [#allocation2], 96
    %v120 = vld [vmem:[%s119] sm:$0xff]
    %v121 = vld [vmem:[%s119 + $0x8] sm:$0xff]
    %v122 = vlaneseq
    %v123 = vshrl.u32 %v122, 7
    %v124 = vsub.s32 0, %v123
    %v125 = vrot.slane %v118, %v124
    %v126 = vsub.f32 %v120, %v125
    %v127 = vsub.f32 %v121, %v125
    %v128 = vand.u32 2147483647, %v126
    %v129 = vand.u32 2147483647, %v127
    %v130 = vadd.f32 %v116, %v128
    %v131 = vadd.f32 %v117, %v129
    %v132 = vld [vmem:[%s0 + $0x7] sm:$0x1]
    %s133 = scalar_lea.vmem [#allocation2], 112
    %v134 = vld [vmem:[%s133] sm:$0xff]
    %v135 = vld [vmem:[%s133 + $0x8] sm:$0xff]
    %v136 = vlaneseq
    %v137 = vshrl.u32 %v136, 7
    %v138 = vsub.s32 0, %v137
    %v139 = vrot.slane %v132, %v138
    %v140 = vsub.f32 %v134, %v139
    %v141 = vsub.f32 %v135, %v139
    %v142 = vand.u32 2147483647, %v140
    %v143 = vand.u32 2147483647, %v141
    %v144 = vadd.f32 %v130, %v142
    %v145 = vadd.f32 %v131, %v143
    %v146 = vld [vmem:[%s0 + $0x8] sm:$0x1]
    %s147 = scalar_lea.vmem [#allocation2], 128
    %v148 = vld [vmem:[%s147] sm:$0xff]
    %v149 = vld [vmem:[%s147 + $0x8] sm:$0xff]
    %v150 = vlaneseq
    %v151 = vshrl.u32 %v150, 7
    %v152 = vsub.s32 0, %v151
    %v153 = vrot.slane %v146, %v152
    %v154 = vsub.f32 %v148, %v153
    %v155 = vsub.f32 %v149, %v153
    %v156 = vand.u32 2147483647, %v154
    %v157 = vand.u32 2147483647, %v155
    %v158 = vadd.f32 %v144, %v156
    %v159 = vadd.f32 %v145, %v157
    %v160 = vld [vmem:[%s0 + $0x9] sm:$0x1]
    %s161 = scalar_lea.vmem [#allocation2], 144
    %v162 = vld [vmem:[%s161] sm:$0xff]
    %v163 = vld [vmem:[%s161 + $0x8] sm:$0xff]
    %v164 = vlaneseq
    %v165 = vshrl.u32 %v164, 7
    %v166 = vsub.s32 0, %v165
    %v167 = vrot.slane %v160, %v166
    %v168 = vsub.f32 %v162, %v167
    %v169 = vsub.f32 %v163, %v167
    %v170 = vand.u32 2147483647, %v168
    %v171 = vand.u32 2147483647, %v169
    %v172 = vadd.f32 %v158, %v170
    %v173 = vadd.f32 %v159, %v171
    %v174 = vld [vmem:[%s0 + $0xa] sm:$0x1]
    %s175 = scalar_lea.vmem [#allocation2], 160
    %v176 = vld [vmem:[%s175] sm:$0xff]
    %v177 = vld [vmem:[%s175 + $0x8] sm:$0xff]
    %v178 = vlaneseq
    %v179 = vshrl.u32 %v178, 7
    %v180 = vsub.s32 0, %v179
    %v181 = vrot.slane %v174, %v180
    %v182 = vsub.f32 %v176, %v181
    %v183 = vsub.f32 %v177, %v181
    %v184 = vand.u32 2147483647, %v182
    %v185 = vand.u32 2147483647, %v183
    %v186 = vadd.f32 %v172, %v184
    %v187 = vadd.f32 %v173, %v185
    %v188 = vld [vmem:[%s0 + $0xb] sm:$0x1]
    %s189 = scalar_lea.vmem [#allocation2], 176
    %v190 = vld [vmem:[%s189] sm:$0xff]
    %v191 = vld [vmem:[%s189 + $0x8] sm:$0xff]
    %v192 = vlaneseq
    %v193 = vshrl.u32 %v192, 7
    %v194 = vsub.s32 0, %v193
    %v195 = vrot.slane %v188, %v194
    %v196 = vsub.f32 %v190, %v195
    %v197 = vsub.f32 %v191, %v195
    %v198 = vand.u32 2147483647, %v196
    %v199 = vand.u32 2147483647, %v197
    %v200 = vadd.f32 %v186, %v198
    %v201 = vadd.f32 %v187, %v199
    %v202 = vld [vmem:[%s0 + $0xc] sm:$0x1]
    %s203 = scalar_lea.vmem [#allocation2], 192
    %v204 = vld [vmem:[%s203] sm:$0xff]
    %v205 = vld [vmem:[%s203 + $0x8] sm:$0xff]
    %v206 = vlaneseq
    %v207 = vshrl.u32 %v206, 7
    %v208 = vsub.s32 0, %v207
    %v209 = vrot.slane %v202, %v208
    %v210 = vsub.f32 %v204, %v209
    %v211 = vsub.f32 %v205, %v209
    %v212 = vand.u32 2147483647, %v210
    %v213 = vand.u32 2147483647, %v211
    %v214 = vadd.f32 %v200, %v212
    %v215 = vadd.f32 %v201, %v213
    %v216 = vld [vmem:[%s0 + $0xd] sm:$0x1]
    %s217 = scalar_lea.vmem [#allocation2], 208
    %v218 = vld [vmem:[%s217] sm:$0xff]
    %v219 = vld [vmem:[%s217 + $0x8] sm:$0xff]
    %v220 = vlaneseq
    %v221 = vshrl.u32 %v220, 7
    %v222 = vsub.s32 0, %v221
    %v223 = vrot.slane %v216, %v222
    %v224 = vsub.f32 %v218, %v223
    %v225 = vsub.f32 %v219, %v223
    %v226 = vand.u32 2147483647, %v224
    %v227 = vand.u32 2147483647, %v225
    %v228 = vadd.f32 %v214, %v226
    %v229 = vadd.f32 %v215, %v227
    %v230 = vld [vmem:[%s0 + $0xe] sm:$0x1]
    %s231 = scalar_lea.vmem [#allocation2], 224
    %v232 = vld [vmem:[%s231] sm:$0xff]
    %v233 = vld [vmem:[%s231 + $0x8] sm:$0xff]
    %v234 = vlaneseq
    %v235 = vshrl.u32 %v234, 7
    %v236 = vsub.s32 0, %v235
    %v237 = vrot.slane %v230, %v236
    %v238 = vsub.f32 %v232, %v237
    %v239 = vsub.f32 %v233, %v237
    %v240 = vand.u32 2147483647, %v238
    %v241 = vand.u32 2147483647, %v239
    %v242 = vadd.f32 %v228, %v240
    %v243 = vadd.f32 %v229, %v241
    %v244 = vld [vmem:[%s0 + $0xf] sm:$0x1]
    %s245 = scalar_lea.vmem [#allocation2], 240
    %v246 = vld [vmem:[%s245] sm:$0xff]
    %v247 = vld [vmem:[%s245 + $0x8] sm:$0xff]
    %v248 = vlaneseq
    %v249 = vshrl.u32 %v248, 7
    %v250 = vsub.s32 0, %v249
    %v251 = vrot.slane %v244, %v250
    %v252 = vsub.f32 %v246, %v251
    %v253 = vsub.f32 %v247, %v251
    %v254 = vand.u32 2147483647, %v252
    %v255 = vand.u32 2147483647, %v253
    %v256 = vadd.f32 %v242, %v254
    %v257 = vadd.f32 %v243, %v255
    %v258 = vld [vmem:[%s0 + $0x10] sm:$0x1]
    %s259 = scalar_lea.vmem [#allocation2], 256
    %v260 = vld [vmem:[%s259] sm:$0xff]
    %v261 = vld [vmem:[%s259 + $0x8] sm:$0xff]
    %v262 = vlaneseq
    %v263 = vshrl.u32 %v262, 7
    %v264 = vsub.s32 0, %v263
    %v265 = vrot.slane %v258, %v264
    %v266 = vsub.f32 %v260, %v265
    %v267 = vsub.f32 %v261, %v265
    %v268 = vand.u32 2147483647, %v266
    %v269 = vand.u32 2147483647, %v267
    %v270 = vadd.f32 %v256, %v268
    %v271 = vadd.f32 %v257, %v269
    %v272 = vld [vmem:[%s0 + $0x11] sm:$0x1]
    %s273 = scalar_lea.vmem [#allocation2], 272
    %v274 = vld [vmem:[%s273] sm:$0xff]
    %v275 = vld [vmem:[%s273 + $0x8] sm:$0xff]
    %v276 = vlaneseq
    %v277 = vshrl.u32 %v276, 7
    %v278 = vsub.s32 0, %v277
    %v279 = vrot.slane %v272, %v278
    %v280 = vsub.f32 %v274, %v279
    %v281 = vsub.f32 %v275, %v279
    %v282 = vand.u32 2147483647, %v280
    %v283 = vand.u32 2147483647, %v281
    %v284 = vadd.f32 %v270, %v282
    %v285 = vadd.f32 %v271, %v283
    %v286 = vld [vmem:[%s0 + $0x12] sm:$0x1]
    %s287 = scalar_lea.vmem [#allocation2], 288
    %v288 = vld [vmem:[%s287] sm:$0xff]
    %v289 = vld [vmem:[%s287 + $0x8] sm:$0xff]
    %v290 = vlaneseq
    %v291 = vshrl.u32 %v290, 7
    %v292 = vsub.s32 0, %v291
    %v293 = vrot.slane %v286, %v292
    %v294 = vsub.f32 %v288, %v293
    %v295 = vsub.f32 %v289, %v293
    %v296 = vand.u32 2147483647, %v294
    %v297 = vand.u32 2147483647, %v295
    %v298 = vadd.f32 %v284, %v296
    %v299 = vadd.f32 %v285, %v297
    %v300 = vld [vmem:[%s0 + $0x13] sm:$0x1]
    %s301 = scalar_lea.vmem [#allocation2], 304
    %v302 = vld [vmem:[%s301] sm:$0xff]
    %v303 = vld [vmem:[%s301 + $0x8] sm:$0xff]
    %v304 = vlaneseq
    %v305 = vshrl.u32 %v304, 7
    %v306 = vsub.s32 0, %v305
    %v307 = vrot.slane %v300, %v306
    %v308 = vsub.f32 %v302, %v307
    %v309 = vsub.f32 %v303, %v307
    %v310 = vand.u32 2147483647, %v308
    %v311 = vand.u32 2147483647, %v309
    %v312 = vadd.f32 %v298, %v310
    %v313 = vadd.f32 %v299, %v311
    %v314 = vld [vmem:[%s0 + $0x14] sm:$0x1]
    %s315 = scalar_lea.vmem [#allocation2], 320
    %v316 = vld [vmem:[%s315] sm:$0xff]
    %v317 = vld [vmem:[%s315 + $0x8] sm:$0xff]
    %v318 = vlaneseq
    %v319 = vshrl.u32 %v318, 7
    %v320 = vsub.s32 0, %v319
    %v321 = vrot.slane %v314, %v320
    %v322 = vsub.f32 %v316, %v321
    %v323 = vsub.f32 %v317, %v321
    %v324 = vand.u32 2147483647, %v322
    %v325 = vand.u32 2147483647, %v323
    %v326 = vadd.f32 %v312, %v324
    %v327 = vadd.f32 %v313, %v325
    %v328 = vld [vmem:[%s0 + $0x15] sm:$0x1]
    %s329 = scalar_lea.vmem [#allocation2], 336
    %v330 = vld [vmem:[%s329] sm:$0xff]
    %v331 = vld [vmem:[%s329 + $0x8] sm:$0xff]
    %v332 = vlaneseq
    %v333 = vshrl.u32 %v332, 7
    %v334 = vsub.s32 0, %v333
    %v335 = vrot.slane %v328, %v334
    %v336 = vsub.f32 %v330, %v335
    %v337 = vsub.f32 %v331, %v335
    %v338 = vand.u32 2147483647, %v336
    %v339 = vand.u32 2147483647, %v337
    %v340 = vadd.f32 %v326, %v338
    %v341 = vadd.f32 %v327, %v339
    %v342 = vld [vmem:[%s0 + $0x16] sm:$0x1]
    %s343 = scalar_lea.vmem [#allocation2], 352
    %v344 = vld [vmem:[%s343] sm:$0xff]
    %v345 = vld [vmem:[%s343 + $0x8] sm:$0xff]
    %v346 = vlaneseq
    %v347 = vshrl.u32 %v346, 7
    %v348 = vsub.s32 0, %v347
    %v349 = vrot.slane %v342, %v348
    %v350 = vsub.f32 %v344, %v349
    %v351 = vsub.f32 %v345, %v349
    %v352 = vand.u32 2147483647, %v350
    %v353 = vand.u32 2147483647, %v351
    %v354 = vadd.f32 %v340, %v352
    %v355 = vadd.f32 %v341, %v353
    %v356 = vld [vmem:[%s0 + $0x17] sm:$0x1]
    %s357 = scalar_lea.vmem [#allocation2], 368
    %v358 = vld [vmem:[%s357] sm:$0xff]
    %v359 = vld [vmem:[%s357 + $0x8] sm:$0xff]
    %v360 = vlaneseq
    %v361 = vshrl.u32 %v360, 7
    %v362 = vsub.s32 0, %v361
    %v363 = vrot.slane %v356, %v362
    %v364 = vsub.f32 %v358, %v363
    %v365 = vsub.f32 %v359, %v363
    %v366 = vand.u32 2147483647, %v364
    %v367 = vand.u32 2147483647, %v365
    %v368 = vadd.f32 %v354, %v366
    %v369 = vadd.f32 %v355, %v367
    %v370 = vld [vmem:[%s0 + $0x18] sm:$0x1]
    %s371 = scalar_lea.vmem [#allocation2], 384
    %v372 = vld [vmem:[%s371] sm:$0xff]
    %v373 = vld [vmem:[%s371 + $0x8] sm:$0xff]
    %v374 = vlaneseq
    %v375 = vshrl.u32 %v374, 7
    %v376 = vsub.s32 0, %v375
    %v377 = vrot.slane %v370, %v376
    %v378 = vsub.f32 %v372, %v377
    %v379 = vsub.f32 %v373, %v377
    %v380 = vand.u32 2147483647, %v378
    %v381 = vand.u32 2147483647, %v379
    %v382 = vadd.f32 %v368, %v380
    %v383 = vadd.f32 %v369, %v381
    %v384 = vld [vmem:[%s0 + $0x19] sm:$0x1]
    %s385 = scalar_lea.vmem [#allocation2], 400
    %v386 = vld [vmem:[%s385] sm:$0xff]
    %v387 = vld [vmem:[%s385 + $0x8] sm:$0xff]
    %v388 = vlaneseq
    %v389 = vshrl.u32 %v388, 7
    %v390 = vsub.s32 0, %v389
    %v391 = vrot.slane %v384, %v390
    %v392 = vsub.f32 %v386, %v391
    %v393 = vsub.f32 %v387, %v391
    %v394 = vand.u32 2147483647, %v392
    %v395 = vand.u32 2147483647, %v393
    %v396 = vadd.f32 %v382, %v394
    %v397 = vadd.f32 %v383, %v395
    %v398 = vld [vmem:[%s0 + $0x1a] sm:$0x1]
    %s399 = scalar_lea.vmem [#allocation2], 416
    %v400 = vld [vmem:[%s399] sm:$0xff]
    %v401 = vld [vmem:[%s399 + $0x8] sm:$0xff]
    %v402 = vlaneseq
    %v403 = vshrl.u32 %v402, 7
    %v404 = vsub.s32 0, %v403
    %v405 = vrot.slane %v398, %v404
    %v406 = vsub.f32 %v400, %v405
    %v407 = vsub.f32 %v401, %v405
    %v408 = vand.u32 2147483647, %v406
    %v409 = vand.u32 2147483647, %v407
    %v410 = vadd.f32 %v396, %v408
    %v411 = vadd.f32 %v397, %v409
    %v412 = vld [vmem:[%s0 + $0x1b] sm:$0x1]
    %s413 = scalar_lea.vmem [#allocation2], 432
    %v414 = vld [vmem:[%s413] sm:$0xff]
    %v415 = vld [vmem:[%s413 + $0x8] sm:$0xff]
    %v416 = vlaneseq
    %v417 = vshrl.u32 %v416, 7
    %v418 = vsub.s32 0, %v417
    %v419 = vrot.slane %v412, %v418
    %v420 = vsub.f32 %v414, %v419
    %v421 = vsub.f32 %v415, %v419
    %v422 = vand.u32 2147483647, %v420
    %v423 = vand.u32 2147483647, %v421
    %v424 = vadd.f32 %v410, %v422
    %v425 = vadd.f32 %v411, %v423
    %v426 = vld [vmem:[%s0 + $0x1c] sm:$0x1]
    %s427 = scalar_lea.vmem [#allocation2], 448
    %v428 = vld [vmem:[%s427] sm:$0xff]
    %v429 = vld [vmem:[%s427 + $0x8] sm:$0xff]
    %v430 = vlaneseq
    %v431 = vshrl.u32 %v430, 7
    %v432 = vsub.s32 0, %v431
    %v433 = vrot.slane %v426, %v432
    %v434 = vsub.f32 %v428, %v433
    %v435 = vsub.f32 %v429, %v433
    %v436 = vand.u32 2147483647, %v434
    %v437 = vand.u32 2147483647, %v435
    %v438 = vadd.f32 %v424, %v436
    %v439 = vadd.f32 %v425, %v437
    %v440 = vld [vmem:[%s0 + $0x1d] sm:$0x1]
    %s441 = scalar_lea.vmem [#allocation2], 464
    %v442 = vld [vmem:[%s441] sm:$0xff]
    %v443 = vld [vmem:[%s441 + $0x8] sm:$0xff]
    %v444 = vlaneseq
    %v445 = vshrl.u32 %v444, 7
    %v446 = vsub.s32 0, %v445
    %v447 = vrot.slane %v440, %v446
    %v448 = vsub.f32 %v442, %v447
    %v449 = vsub.f32 %v443, %v447
    %v450 = vand.u32 2147483647, %v448
    %v451 = vand.u32 2147483647, %v449
    %v452 = vadd.f32 %v438, %v450
    %v453 = vadd.f32 %v439, %v451
    %v454 = vld [vmem:[%s0 + $0x1e] sm:$0x1]
    %s455 = scalar_lea.vmem [#allocation2], 480
    %v456 = vld [vmem:[%s455] sm:$0xff]
    %v457 = vld [vmem:[%s455 + $0x8] sm:$0xff]
    %v458 = vlaneseq
    %v459 = vshrl.u32 %v458, 7
    %v460 = vsub.s32 0, %v459
    %v461 = vrot.slane %v454, %v460
    %v462 = vsub.f32 %v456, %v461
    %v463 = vsub.f32 %v457, %v461
    %v464 = vand.u32 2147483647, %v462
    %v465 = vand.u32 2147483647, %v463
    %v466 = vadd.f32 %v452, %v464
    %v467 = vadd.f32 %v453, %v465
    %v468 = vld [vmem:[%s0 + $0x1f] sm:$0x1]
    %s469 = scalar_lea.vmem [#allocation2], 496
    %v470 = vld [vmem:[%s469] sm:$0xff]
    %v471 = vld [vmem:[%s469 + $0x8] sm:$0xff]
    %v472 = vlaneseq
    %v473 = vshrl.u32 %v472, 7
    %v474 = vsub.s32 0, %v473
    %v475 = vrot.slane %v468, %v474
    %v476 = vsub.f32 %v470, %v475
    %v477 = vsub.f32 %v471, %v475
    %v478 = vand.u32 2147483647, %v476
    %v479 = vand.u32 2147483647, %v477
    %v480 = vadd.f32 %v466, %v478
    %v481 = vadd.f32 %v467, %v479
    %v482 = vld [vmem:[%s2] sm:$0xff]
    %v483 = vld [vmem:[%s2 + $0x8] sm:$0xff]
    %v484 = vsub.f32 %v482, %v480
    %v485 = vsub.f32 %v483, %v481
    %v486 = vmul.f32 %v484, 4.0
    %v487 = vmul.f32 %v485, 4.0
    %v488 = vxor.u32 %v486, 2147483648
    %v489 = vxor.u32 %v487, 2147483648
    %v490 = vmul.f32 %v488, 1.442695
    %v491 = vpow.pop %v490
    %v492 = vmul.f32 %v489, 1.442695
    %v493 = vpow.pop %v492
    %v494 = vadd.f32 %v491, 1.0
    %v495 = vadd.f32 %v493, 1.0
    %v496 = vrcp.pop %v494
    %v497 = vmul.f32 1.0, %v496
    %v498 = vrcp.pop %v495
    %v499 = vmul.f32 1.0, %v498
    %500 = vst [vmem:[#allocation5] sm:$0xff] %v497
    %501 = vst [vmem:[#allocation5 + $0x8] sm:$0xff] %v499
    %v502 = vld [vmem:[%s3] sm:$0x1]
    %v504 = vlaneseq
    %v505 = vshrl.u32 %v504, 7
    %v506 = vsub.s32 0, %v505
    %v507 = vrot.slane %v502, %v506
    %v509 = vmul.f32 %v507, %v497
    %v510 = vmul.f32 %v507, %v499
    %511 = vst [vmem:[#allocation6] sm:$0xff] %v509
    %512 = vst [vmem:[#allocation6 + $0x8] sm:$0xff] %v510
    // Predicated region
    $region22: #{_execute.1} parent=1 // pred_check
      _
    $region23: #{_execute.1} parent=1 // pred_check_branch
      %514 = sbr.rel (0) target = $region25
    $region24: #{_execute.1} parent=1 // pred_region
      %s516 = ssub.s32 256, 256
      %517 = vsyncadd [#allocation4], %s516
      %s518 = sshll.u32 [#allocation5], 4
      %s519 = int_to_ptr.vmem [resolvable:$true] %s518
      %524 = dma.vmem_to_hbm [thread:$0]  %s519, 256, %s4, [#allocation4], 128, 128, 8
    $region25: #{_execute.1} parent=1 // pred_fallthru
      _
    // Predicated region
    $region26: #{_execute.1} parent=1 // pred_check
      _
    $region27: #{_execute.1} parent=1 // pred_check_branch
      %526 = sbr.rel (0) target = $region29
    $region28: #{_execute.1} parent=1 // pred_region
      %s528 = ssub.s32 256, 256
      %529 = vsyncadd [#allocation7], %s528
      %s530 = sshll.u32 [#allocation6], 4
      %s531 = int_to_ptr.vmem [resolvable:$true] %s530
      %536 = dma.vmem_to_hbm [thread:$0]  %s531, 256, %s5, [#allocation7], 128, 128, 8
    $region29: #{_execute.1} parent=1 // pred_fallthru
      _
    // Predicated region
    $region30: #{_execute.1} parent=1 // pred_check
      _
    $region31: #{_execute.1} parent=1 // pred_check_branch
      %538 = sbr.rel (0) target = $region33
    $region32: #{_execute.1} parent=1 // pred_region
      %539 = dma.done [#allocation4], 256
    $region33: #{_execute.1} parent=1 // pred_fallthru
      _
    // Predicated region
    $region34: #{_execute.1} parent=1 // pred_check
      _
    $region35: #{_execute.1} parent=1 // pred_check_branch
      %541 = sbr.rel (0) target = $region37
    $region36: #{_execute.1} parent=1 // pred_region
      %542 = dma.done [#allocation7], 256
    $region37: #{_execute.1} parent=1 // pred_fallthru
      _
    %543 = vsyncpa [#allocation3], 1
    %544 = vsyncpa [#allocation4], 1
    %545 = vsyncpa [#allocation7], 1

</llo_original>
